<compile_context>
chip_gen: v6e
topology: v6e:2x2x1
jax: 0.10.0
libtpu: 0.0.40
codegen_flags: <defaults>
</compile_context>

<pallas_src>
import jax
import jax.numpy as jnp
from jax.experimental import pallas as pl
from jax.experimental.pallas import tpu as pltpu

ALPHA = 0.25
GAMMA = 2.0   # implemented as an explicit square
BETA = 1.0    # smooth-l1 transition point
EPS = 1e-6


def _pick_chunk_rows(sub_total, c_reg, itemsize):
    """Rows (of 128 lanes) per pipeline step along the flattened spatial axis."""
    granule = 8 * max(1, 4 // itemsize)          # 8 f32 / 16 bf16 / 32 int8 rows
    target_bytes = 8 << 20                       # ~8 MiB combined input per step
    per_row = 128 * (c_reg + 2) * itemsize       # C reg rows + cls row + ctr row
    max_rows = max(granule, (target_bytes // per_row) // granule * granule)
    return sub_total if sub_total <= max_rows else max_rows


def _make_kernel(chunk_sub, acc_rows, sub_total, has_tail):
    groups = chunk_sub // acc_rows

    def fold(val2d):
        # (chunk_sub, 128) -> (acc_rows, 128), sublane-aligned VPU adds only.
        if groups == 1:
            return val2d
        return val2d.reshape(groups, acc_rows, 128).sum(axis=0)

    def kernel(cls_ref, ctr_ref, reg_ref, cls_out, reg_out, w_out):
        x = cls_ref[...].astype(jnp.float32)[0]      # (chunk_sub, 128) logits
        t = ctr_ref[...].astype(jnp.float32)[0]      # (chunk_sub, 128) center target
        r = reg_ref[...].astype(jnp.float32)[0]      # (C, chunk_sub, 128)

        # ---- sigmoid focal loss (classification branch) ----
        # single transcendental chain: log(1-p)=log_sigmoid(-x), log(p)=x+log(1-p)
        log_1mp = jax.nn.log_sigmoid(-x)
        log_p = x + log_1mp
        one_minus_p = jnp.exp(log_1mp)
        p = 1.0 - one_minus_p
        focal = (-ALPHA * t * (one_minus_p * one_minus_p) * log_p
                 - (1.0 - ALPHA) * (1.0 - t) * (p * p) * log_1mp)

        # ---- center-weighted smooth-L1 (regression branch), min-form Huber ----
        d = r - t[None]                              # broadcast center over C
        ad = jnp.abs(d)
        m = jnp.minimum(ad, BETA)
        sl1 = m * (ad - 0.5 * m)
        if BETA != 1.0:
            sl1 = sl1 * (1.0 / BETA)
        sl1_sum = jnp.sum(sl1, axis=0)               # (chunk_sub, 128)
        reg_c = t * sl1_sum                          # weight factored out of C-sum
        w_c = t                                      # * C applied outside the kernel

        if has_tail:
            # Last chunk extends past the array; mask the undefined padded rows.
            s = pl.program_id(1)
            rows = jax.lax.broadcasted_iota(jnp.int32, (chunk_sub, 128), 0)
            valid = rows < (sub_total - s * chunk_sub)
            focal = jnp.where(valid, focal, 0.0)
            reg_c = jnp.where(valid, reg_c, 0.0)
            w_c = jnp.where(valid, w_c, 0.0)

        cls_out[...] = fold(focal)[None, None]
        reg_out[...] = fold(reg_c)[None, None]
        w_out[...] = fold(w_c)[None, None]

    return kernel


def loss_forward(cls_input, reg_input, center_rate, *, chunk_rows=None):
    """JAX/Pallas equivalent of Loss.forward((cls_input, reg_input), center_rate).

    cls_input:   (N, 1, H, W) float logits
    reg_input:   (N, C, H, W) float regression map
    center_rate: (N, 1, H, W) float target in [0, 1]
    Returns (cls_loss, reg_loss) scalars (float32).
    """
    n, c1, h, w = cls_input.shape
    _, c, _, _ = reg_input.shape
    assert c1 == 1, "classification / center maps are single channel"
    assert center_rate.shape == cls_input.shape

    hw = h * w
    hw_pad = pl.cdiv(hw, 128) * 128
    cls_f = cls_input.reshape(n, hw)
    ctr_f = center_rate.reshape(n, hw)
    reg_f = reg_input.reshape(n, c, hw)
    if hw_pad != hw:
        # Pad with values that contribute exactly zero to every sum:
        # focal(x=-50, t=0) == 0 in f32; t=0 zeroes both regression terms.
        pad = hw_pad - hw
        cls_f = jnp.pad(cls_f, ((0, 0), (0, pad)), constant_values=-50.0)
        ctr_f = jnp.pad(ctr_f, ((0, 0), (0, pad)), constant_values=0.0)
        reg_f = jnp.pad(reg_f, ((0, 0), (0, 0), (0, pad)), constant_values=0.0)

    sub = hw_pad // 128
    itemsize = jnp.dtype(reg_input.dtype).itemsize
    chunk_sub = chunk_rows if chunk_rows is not None else _pick_chunk_rows(sub, c, itemsize)
    chunk_sub = min(chunk_sub, sub)
    n_chunks = pl.cdiv(sub, chunk_sub)
    has_tail = (sub % chunk_sub) != 0
    acc_rows = 8 if chunk_sub % 8 == 0 else chunk_sub

    # Lane/sublane-dense layouts.
    cls3 = cls_f.reshape(n, sub, 128)
    ctr3 = ctr_f.reshape(n, sub, 128)
    reg4 = reg_f.reshape(n, c, sub, 128)

    # Explicit VMEM budget: double-buffered inputs + outputs + margin (>= 32 MiB
    # floor so the v5e 16 MiB scoped default never caps pipelining; <= 64 MiB so
    # it is always physically valid, incl. v7x).
    in_bytes = chunk_sub * 128 * (c + 2) * itemsize
    out_bytes = 3 * acc_rows * 128 * 4
    vmem_limit = min(64 << 20, max(32 << 20, 2 * (in_bytes + out_bytes) + (2 << 20)))

    part_shape = jax.ShapeDtypeStruct((n, n_chunks, acc_rows, 128), jnp.float32)
    part_spec = pl.BlockSpec((1, 1, acc_rows, 128), lambda b, s: (b, s, 0, 0))

    cls_part, reg_part, w_part = pl.pallas_call(
        _make_kernel(chunk_sub, acc_rows, sub, has_tail),
        out_shape=(part_shape, part_shape, part_shape),
        grid=(n, n_chunks),
        in_specs=[
            pl.BlockSpec((1, chunk_sub, 128), lambda b, s: (b, s, 0)),
            pl.BlockSpec((1, chunk_sub, 128), lambda b, s: (b, s, 0)),
            pl.BlockSpec((1, c, chunk_sub, 128), lambda b, s: (b, 0, s, 0)),
        ],
        out_specs=(part_spec, part_spec, part_spec),
        compiler_params=pltpu.CompilerParams(
            dimension_semantics=("parallel", "parallel"),
            vmem_limit_bytes=int(vmem_limit)),
    )(cls3, ctr3, reg4)

    # Tiny final reductions in plain JAX (denominators use the UNPADDED counts).
    cls_loss = jnp.sum(cls_part) / jnp.float32(n * c1 * hw)
    reg_loss = jnp.sum(reg_part) / (jnp.float32(c) * jnp.sum(w_part) + EPS)
    return cls_loss, reg_loss


def _reference(cls_input, reg_input, center_rate):
    x = cls_input.astype(jnp.float32)
    t = center_rate.astype(jnp.float32)
    p = jax.nn.sigmoid(x)
    focal = (-ALPHA * t * (1 - p) ** 2 * jax.nn.log_sigmoid(x)
             - (1 - ALPHA) * (1 - t) * p ** 2 * jax.nn.log_sigmoid(-x))
    cls_loss = jnp.mean(focal)

    t_b = jnp.broadcast_to(t, reg_input.shape)
    d = reg_input.astype(jnp.float32) - t_b
    ad = jnp.abs(d)
    sl1 = jnp.where(ad < BETA, 0.5 * d * d / BETA, ad - 0.5 * BETA)
    reg_loss = jnp.sum(t_b * sl1) / (jnp.sum(t_b) + EPS)
    return cls_loss, reg_loss


if __name__ == "__main__":
    key = jax.random.PRNGKey(0)
    k1, k2, k3, k4, k5, k6 = jax.random.split(key, 6)

    # Test 1: lane-aligned shape, single chunk per batch element.
    N, C_REG, H, W = 2, 4, 16, 16
    cls_input = jax.random.normal(k1, (N, 1, H, W), dtype=jnp.float32)
    reg_input = jax.random.normal(k2, (N, C_REG, H, W), dtype=jnp.float32)
    center_rate = jax.random.uniform(k3, (N, 1, H, W), dtype=jnp.float32)

    cls_loss, reg_loss = jax.block_until_ready(
        loss_forward(cls_input, reg_input, center_rate))
    ref_cls, ref_reg = _reference(cls_input, reg_input, center_rate)
    assert jnp.allclose(cls_loss, ref_cls, rtol=1e-4, atol=1e-5), (cls_loss, ref_cls)
    assert jnp.allclose(reg_loss, ref_reg, rtol=1e-4, atol=1e-5), (reg_loss, ref_reg)

    # Test 2: non-128-multiple H*W (lane padding) + forced small chunk so the
    # cdiv grid has a masked tail chunk.
    N2, H2, W2 = 1, 41, 41    # hw=1681 -> pad to 1792 (14 rows); chunks of 8 -> tail
    cls2 = jax.random.normal(k4, (N2, 1, H2, W2), dtype=jnp.float32)
    reg2 = jax.random.normal(k5, (N2, C_REG, H2, W2), dtype=jnp.float32)
    ctr2 = jax.random.uniform(k6, (N2, 1, H2, W2), dtype=jnp.float32)

    cls_loss2, reg_loss2 = jax.block_until_ready(
        loss_forward(cls2, reg2, ctr2, chunk_rows=8))
    ref_cls2, ref_reg2 = _reference(cls2, reg2, ctr2)
    assert jnp.allclose(cls_loss2, ref_cls2, rtol=1e-4, atol=1e-5), (cls_loss2, ref_cls2)
    assert jnp.allclose(reg_loss2, ref_reg2, rtol=1e-4, atol=1e-5), (reg_loss2, ref_reg2)

    print("KERNEL_OK")
</pallas_src>

<mosaic_0001>
module attributes {stable_mosaic.version = 11 : i64} {
  func.func @kernel(%arg0: i32, %arg1: i32, %arg2: memref<1x2x128xf32, #tpu.memory_space<vmem>>, %arg3: memref<1x2x128xf32, #tpu.memory_space<vmem>>, %arg4: memref<1x4x2x128xf32, #tpu.memory_space<vmem>>, %arg5: memref<1x1x2x128xf32, #tpu.memory_space<vmem>>, %arg6: memref<1x1x2x128xf32, #tpu.memory_space<vmem>>, %arg7: memref<1x1x2x128xf32, #tpu.memory_space<vmem>>) attributes {dimension_semantics = [#tpu.dimension_semantics<parallel>, #tpu.dimension_semantics<parallel>], iteration_bounds = array<i64: 2, 1>, scalar_prefetch = 0 : i64, scratch_operands = 0 : i64, tpu.core_type = #tpu.core_type<tc>, window_params = [{transform_indices = @transform_0, window_bounds = array<i64: 1, 2, 128>}, {transform_indices = @transform_1, window_bounds = array<i64: 1, 2, 128>}, {transform_indices = @transform_2, window_bounds = array<i64: 1, 4, 2, 128>}, {transform_indices = @transform_3, window_bounds = array<i64: 1, 1, 2, 128>}, {transform_indices = @transform_4, window_bounds = array<i64: 1, 1, 2, 128>}, {transform_indices = @transform_5, window_bounds = array<i64: 1, 1, 2, 128>}]} {
    %c0 = arith.constant 0 : index
    %c0_0 = arith.constant 0 : index
    %c0_1 = arith.constant 0 : index
    %0 = vector.load %arg2[%c0, %c0_0, %c0_1] : memref<1x2x128xf32, #tpu.memory_space<vmem>>, vector<1x2x128xf32>
    %1 = vector.shape_cast %0 : vector<1x2x128xf32> to vector<2x128xf32>
    %c0_2 = arith.constant 0 : index
    %c0_3 = arith.constant 0 : index
    %c0_4 = arith.constant 0 : index
    %2 = vector.load %arg3[%c0_2, %c0_3, %c0_4] : memref<1x2x128xf32, #tpu.memory_space<vmem>>, vector<1x2x128xf32>
    %3 = vector.shape_cast %2 : vector<1x2x128xf32> to vector<2x128xf32>
    %c0_5 = arith.constant 0 : index
    %c0_6 = arith.constant 0 : index
    %c0_7 = arith.constant 0 : index
    %c0_8 = arith.constant 0 : index
    %4 = vector.load %arg4[%c0_5, %c0_6, %c0_7, %c0_8] : memref<1x4x2x128xf32, #tpu.memory_space<vmem>>, vector<1x4x2x128xf32>
    %5 = vector.shape_cast %4 : vector<1x4x2x128xf32> to vector<4x2x128xf32>
    %cst = arith.constant 0.000000e+00 : f32
    %6 = vector.broadcast %cst : f32 to vector<2x128xf32>
    %7 = arith.subf %6, %1 : vector<2x128xf32>
    %cst_9 = arith.constant 0.000000e+00 : f32
    %8 = vector.broadcast %cst_9 : f32 to vector<2x128xf32>
    %9 = arith.subf %8, %7 : vector<2x128xf32>
    %cst_10 = arith.constant 0.000000e+00 : f32
    %10 = vector.broadcast %cst_10 : f32 to vector<2x128xf32>
    %11 = arith.maximumf %9, %10 : vector<2x128xf32>
    %12 = vector.broadcast %cst_10 : f32 to vector<2x128xf32>
    %13 = arith.subf %9, %12 : vector<2x128xf32>
    %14 = arith.cmpf one, %13, %13 : vector<2x128xf32>
    %15 = vector.broadcast %cst_10 : f32 to vector<2x128xf32>
    %16 = arith.addf %9, %15 : vector<2x128xf32>
    %17 = math.absf %13 : vector<2x128xf32>
    %cst_11 = arith.constant 0.000000e+00 : f32
    %18 = vector.broadcast %cst_11 : f32 to vector<2x128xf32>
    %19 = arith.subf %18, %17 : vector<2x128xf32>
    %20 = math.exp %19 : vector<2x128xf32>
    %21 = math.log1p %20 : vector<2x128xf32>
    %22 = arith.addf %11, %21 : vector<2x128xf32>
    %23 = arith.select %14, %16, %22 : vector<2x128xi1>, vector<2x128xf32>
    %cst_12 = arith.constant 0.000000e+00 : f32
    %24 = vector.broadcast %cst_12 : f32 to vector<2x128xf32>
    %25 = arith.subf %24, %23 : vector<2x128xf32>
    %26 = arith.addf %1, %25 : vector<2x128xf32>
    %27 = math.exp %25 : vector<2x128xf32>
    %cst_13 = arith.constant 1.000000e+00 : f32
    %28 = vector.broadcast %cst_13 : f32 to vector<2x128xf32>
    %29 = arith.subf %28, %27 : vector<2x128xf32>
    %cst_14 = arith.constant -2.500000e-01 : f32
    %30 = vector.broadcast %cst_14 : f32 to vector<2x128xf32>
    %31 = arith.mulf %30, %3 : vector<2x128xf32>
    %32 = arith.mulf %27, %27 : vector<2x128xf32>
    %33 = arith.mulf %31, %32 : vector<2x128xf32>
    %34 = arith.mulf %33, %26 : vector<2x128xf32>
    %cst_15 = arith.constant 1.000000e+00 : f32
    %35 = vector.broadcast %cst_15 : f32 to vector<2x128xf32>
    %36 = arith.subf %35, %3 : vector<2x128xf32>
    %cst_16 = arith.constant 7.500000e-01 : f32
    %37 = vector.broadcast %cst_16 : f32 to vector<2x128xf32>
    %38 = arith.mulf %37, %36 : vector<2x128xf32>
    %39 = arith.mulf %29, %29 : vector<2x128xf32>
    %40 = arith.mulf %38, %39 : vector<2x128xf32>
    %41 = arith.mulf %40, %25 : vector<2x128xf32>
    %42 = arith.subf %34, %41 : vector<2x128xf32>
    %43 = vector.shape_cast %3 : vector<2x128xf32> to vector<1x2x128xf32>
    %44 = vector.broadcast %43 : vector<1x2x128xf32> to vector<4x2x128xf32>
    %45 = arith.subf %5, %44 : vector<4x2x128xf32>
    %46 = math.absf %45 : vector<4x2x128xf32>
    %cst_17 = arith.constant 1.000000e+00 : f32
    %47 = vector.broadcast %cst_17 : f32 to vector<4x2x128xf32>
    %48 = arith.minimumf %46, %47 : vector<4x2x128xf32>
    %cst_18 = arith.constant 5.000000e-01 : f32
    %49 = vector.broadcast %cst_18 : f32 to vector<4x2x128xf32>
    %50 = arith.mulf %49, %48 : vector<4x2x128xf32>
    %51 = arith.subf %46, %50 : vector<4x2x128xf32>
    %52 = arith.mulf %48, %51 : vector<4x2x128xf32>
    %cst_19 = arith.constant dense<0.000000e+00> : vector<2x128xf32>
    %53 = vector.multi_reduction <add>, %52, %cst_19 [0] : vector<4x2x128xf32> to vector<2x128xf32>
    %54 = arith.mulf %3, %53 : vector<2x128xf32>
    %55 = vector.shape_cast %42 : vector<2x128xf32> to vector<1x1x2x128xf32>
    %c0_20 = arith.constant 0 : index
    %c0_21 = arith.constant 0 : index
    %c0_22 = arith.constant 0 : index
    %c0_23 = arith.constant 0 : index
    %56 = vector.load %arg5[%c0_20, %c0_21, %c0_22, %c0_23] : memref<1x1x2x128xf32, #tpu.memory_space<vmem>>, vector<1x1x2x128xf32>
    tpu.vector_store %arg5[%c0_20, %c0_21, %c0_22, %c0_23], %55 {strides = array<i32>} : memref<1x1x2x128xf32, #tpu.memory_space<vmem>>, vector<1x1x2x128xf32>,
    %57 = vector.shape_cast %54 : vector<2x128xf32> to vector<1x1x2x128xf32>
    %c0_24 = arith.constant 0 : index
    %c0_25 = arith.constant 0 : index
    %c0_26 = arith.constant 0 : index
    %c0_27 = arith.constant 0 : index
    %58 = vector.load %arg6[%c0_24, %c0_25, %c0_26, %c0_27] : memref<1x1x2x128xf32, #tpu.memory_space<vmem>>, vector<1x1x2x128xf32>
    tpu.vector_store %arg6[%c0_24, %c0_25, %c0_26, %c0_27], %57 {strides = array<i32>} : memref<1x1x2x128xf32, #tpu.memory_space<vmem>>, vector<1x1x2x128xf32>,
    %59 = vector.shape_cast %3 : vector<2x128xf32> to vector<1x1x2x128xf32>
    %c0_28 = arith.constant 0 : index
    %c0_29 = arith.constant 0 : index
    %c0_30 = arith.constant 0 : index
    %c0_31 = arith.constant 0 : index
    %60 = vector.load %arg7[%c0_28, %c0_29, %c0_30, %c0_31] : memref<1x1x2x128xf32, #tpu.memory_space<vmem>>, vector<1x1x2x128xf32>
    tpu.vector_store %arg7[%c0_28, %c0_29, %c0_30, %c0_31], %59 {strides = array<i32>} : memref<1x1x2x128xf32, #tpu.memory_space<vmem>>, vector<1x1x2x128xf32>,
    return
  }
  func.func @transform_0(%arg0: i32, %arg1: i32) -> (i32, i32, i32) {
    %c0_i32 = arith.constant 0 : i32
    %c0_i32_0 = arith.constant 0 : i32
    return %arg0, %arg1, %c0_i32 : i32, i32, i32
  }
  func.func @transform_1(%arg0: i32, %arg1: i32) -> (i32, i32, i32) {
    %c0_i32 = arith.constant 0 : i32
    %c0_i32_0 = arith.constant 0 : i32
    return %arg0, %arg1, %c0_i32 : i32, i32, i32
  }
  func.func @transform_2(%arg0: i32, %arg1: i32) -> (i32, i32, i32, i32) {
    %c0_i32 = arith.constant 0 : i32
    %c0_i32_0 = arith.constant 0 : i32
    %c0_i32_1 = arith.constant 0 : i32
    return %arg0, %c0_i32, %arg1, %c0_i32_0 : i32, i32, i32, i32
  }
  func.func @transform_3(%arg0: i32, %arg1: i32) -> (i32, i32, i32, i32) {
    %c0_i32 = arith.constant 0 : i32
    %c0_i32_0 = arith.constant 0 : i32
    %c0_i32_1 = arith.constant 0 : i32
    return %arg0, %arg1, %c0_i32, %c0_i32_0 : i32, i32, i32, i32
  }
  func.func @transform_4(%arg0: i32, %arg1: i32) -> (i32, i32, i32, i32) {
    %c0_i32 = arith.constant 0 : i32
    %c0_i32_0 = arith.constant 0 : i32
    %c0_i32_1 = arith.constant 0 : i32
    return %arg0, %arg1, %c0_i32, %c0_i32_0 : i32, i32, i32, i32
  }
  func.func @transform_5(%arg0: i32, %arg1: i32) -> (i32, i32, i32, i32) {
    %c0_i32 = arith.constant 0 : i32
    %c0_i32_0 = arith.constant 0 : i32
    %c0_i32_1 = arith.constant 0 : i32
    return %arg0, %arg1, %c0_i32, %c0_i32_0 : i32, i32, i32, i32
  }
}

</mosaic_0001>

<llo_original>
// kernel: tpu_custom_call.1
$region0: #{tpu_custom_call.1}
  #allocation0 [shape = 'u32[]', space=smem, size = 0x4, offset = 0x4, fixed_abs, tag = 'smem constant byte address 0x4 - core index']
  #allocation1 [shape = 'u32[144,128]{1,0:T(1,128)}', space=vmem, size = 0x12000, scoped, tag = 'internal scratch']
  %s0 = inlined_call_operand.hbm [shape: f32[2,2,128], index: 0, kind: input, shape index: {}]
  %s1 = inlined_call_operand.hbm [shape: f32[2,2,128], index: 1, kind: input, shape index: {}]
  %s2 = inlined_call_operand.hbm [shape: f32[2,4,2,128], index: 2, kind: input, shape index: {}]
  %s3 = inlined_call_operand.hbm [shape: f32[2,1,2,128], index: 3, kind: output, shape index: {0}]
  %s4 = inlined_call_operand.hbm [shape: f32[2,1,2,128], index: 4, kind: output, shape index: {1}]
  %s5 = inlined_call_operand.hbm [shape: f32[2,1,2,128], index: 5, kind: output, shape index: {2}]
  %6 = xla_tuple %s3, %s4, %s5
  %s7 = sld [smem:[#allocation0]]
  $region73: #{tpu_custom_call.1} parent=0
    _
  %s9 = ssub.s32 1, %s7
  %s10 = scalar_select 0, %s9, %s7
  $region1: #{tpu_custom_call.1} parent=0
    #allocation2 [shape = 'u8[2048]{0}', space=vmem, size = 0x800, scoped, tag = 'input window, operand 0']
    #allocation3 [shape = 's32[2]{0}', space=sflag, size = 0x8, scoped, tag = 'scoped memory for tpu_custom_call.1']
    #allocation4 [shape = 's32[2]{0}', space=sflag, size = 0x8, scoped, tag = 'scoped memory for tpu_custom_call.1']
    #allocation5 [shape = 'u8[2048]{0}', space=vmem, size = 0x800, scoped, tag = 'input window, operand 1']
    #allocation6 [shape = 's32[2]{0}', space=sflag, size = 0x8, scoped, tag = 'scoped memory for tpu_custom_call.1']
    #allocation7 [shape = 'u8[8192]{0}', space=vmem, size = 0x2000, scoped, tag = 'input window, operand 2']
    #allocation8 [shape = 'u8[2048]{0}', space=vmem, size = 0x800, scoped, tag = 'output window, operand 0']
    #allocation9 [shape = 'u8[2048]{0}', space=vmem, size = 0x800, scoped, tag = 'output window, operand 1']
    #allocation10 [shape = 's32[2]{0}', space=sflag, size = 0x8, scoped, tag = 'scoped memory for tpu_custom_call.1']
    #allocation11 [shape = 'u8[2048]{0}', space=vmem, size = 0x800, scoped, tag = 'output window, operand 2']
    %11 = vsyncpa [#allocation3], 0
    %s12 = scalar_lea.sflag [#allocation3], 1
    %13 = vsyncpa %s12, 0
    %14 = vsyncpa [#allocation6], 0
    %s15 = scalar_lea.sflag [#allocation6], 1
    %16 = vsyncpa %s15, 0
    %17 = vsyncpa [#allocation4], 0
    %s18 = scalar_lea.sflag [#allocation4], 1
    %19 = vsyncpa %s18, 0
    %20 = vsyncpa [#allocation10], 0
    %s21 = scalar_lea.sflag [#allocation10], 1
    %22 = vsyncpa %s21, 0
    loop: start=0, step=1, limit=4
    $region2: #{tpu_custom_call.1} parent=1 // loop_pre_header
      _
    $region3: #{tpu_custom_call.1} parent=1 // loop_header
      %s24 = sphi 0, %s28
      %p25 = scmp.ge.s32.totalorder %s24, 4
      %s31 = sphi 0, %s43
      %s32 = sphi 0, %s39
      %s33 = sphi 0, %s31
      %s34 = sphi 0, %s32
      %s35 = sphi 0, %s33
      %s36 = sphi 0, %s34
      %s48 = sphi 0, %s50
      %s51 = sphi 0, %s48
      %s52 = sphi 0, %s51
      %s68 = sphi 0, %s52
      %s76 = sphi 0, %s78
      %s79 = sphi 0, %s76
      %s80 = sphi 0, %s79
      %s96 = sphi 0, %s80
      %s104 = sphi 0, %s106
      %s107 = sphi 0, %s104
      %s108 = sphi 0, %s107
      %s124 = sphi 0, %s108
      %s132 = sphi 0, %s134
      %s135 = sphi 0, %s132
      %s136 = sphi 0, %s135
      %s152 = sphi 0, %s136
      %s160 = sphi 0, %s162
      %s163 = sphi 0, %s160
      %s164 = sphi 0, %s163
      %s180 = sphi 0, %s164
      %s188 = sphi 0, %s190
      %s191 = sphi 0, %s188
      %s192 = sphi 0, %s191
      %s208 = sphi 0, %s192
    $region4: #{tpu_custom_call.1} parent=1 // loop_header_branch
      %27 = sbr.rel (%p25) target = $region8
    $region5: #{tpu_custom_call.1} parent=1 // loop_body
      %s29 = ssub.s32 %s24, 1
      %s30 = ssub.s32 %s24, 2
      %s37 = sadd.s32 1, %s32
      %p38 = scmp.ge.s32.totalorder %s37, 1
      %s39 = scalar_select %p38, 0, %s37
      %s40 = sadd.s32 1, %s31
      %s41 = scalar_select %p38, %s40, %s31
      %p42 = scmp.ge.s32.totalorder %s41, 2
      %s43 = scalar_select %p42, 0, %s41
      %s44 = ssub.s32 %s31, %s43
      %s45 = ssub.s32 %s32, %s39
      %s46 = sor.u32 %s44, %s45
      %p47 = scmp.eq.s32.totalorder %s46, 0
      %s49 = sadd.s32 %s48, 1
      %s50 = scalar_select %p47, %s48, %s49
      %p53 = pneg %p47
      %p54 = scmp.eq.s32.totalorder %s24, 1
      %p55 = por %p53, %p54
      %p56 = scmp.ne.s32.totalorder %s48, %s51
      %p57 = scmp.eq.s32.totalorder %s24, 0
      %p58 = por %p56, %p57
      %p59 = scmp.ne.s32.totalorder %s48, %s51
      %p60 = scmp.eq.s32.totalorder %s29, 1
      %p61 = por %p59, %p60
      %p62 = scmp.ne.s32.totalorder %s51, %s52
      %p63 = scmp.eq.s32.totalorder %s29, 0
      %p64 = por %p62, %p63
      %p65 = scmp.ne.s32.totalorder %s51, %s52
      %p66 = scmp.eq.s32.totalorder %s30, 1
      %p67 = por %p65, %p66
      %p69 = scmp.ne.s32.totalorder %s52, %s68
      %p70 = scmp.eq.s32.totalorder %s30, 0
      %p71 = por %p69, %p70
      %s72 = ssub.s32 %s31, %s43
      %s73 = ssub.s32 %s32, %s39
      %s74 = sor.u32 %s72, %s73
      %p75 = scmp.eq.s32.totalorder %s74, 0
      %s77 = sadd.s32 %s76, 1
      %s78 = scalar_select %p75, %s76, %s77
      %p81 = pneg %p75
      %p82 = scmp.eq.s32.totalorder %s24, 1
      %p83 = por %p81, %p82
      %p84 = scmp.ne.s32.totalorder %s76, %s79
      %p85 = scmp.eq.s32.totalorder %s24, 0
      %p86 = por %p84, %p85
      %p87 = scmp.ne.s32.totalorder %s76, %s79
      %p88 = scmp.eq.s32.totalorder %s29, 1
      %p89 = por %p87, %p88
      %p90 = scmp.ne.s32.totalorder %s79, %s80
      %p91 = scmp.eq.s32.totalorder %s29, 0
      %p92 = por %p90, %p91
      %p93 = scmp.ne.s32.totalorder %s79, %s80
      %p94 = scmp.eq.s32.totalorder %s30, 1
      %p95 = por %p93, %p94
      %p97 = scmp.ne.s32.totalorder %s80, %s96
      %p98 = scmp.eq.s32.totalorder %s30, 0
      %p99 = por %p97, %p98
      %s100 = ssub.s32 %s31, %s43
      %s101 = ssub.s32 %s32, %s39
      %s102 = sor.u32 %s100, %s101
      %p103 = scmp.eq.s32.totalorder %s102, 0
      %s105 = sadd.s32 %s104, 1
      %s106 = scalar_select %p103, %s104, %s105
      %p109 = pneg %p103
      %p110 = scmp.eq.s32.totalorder %s24, 1
      %p111 = por %p109, %p110
      %p112 = scmp.ne.s32.totalorder %s104, %s107
      %p113 = scmp.eq.s32.totalorder %s24, 0
      %p114 = por %p112, %p113
      %p115 = scmp.ne.s32.totalorder %s104, %s107
      %p116 = scmp.eq.s32.totalorder %s29, 1
      %p117 = por %p115, %p116
      %p118 = scmp.ne.s32.totalorder %s107, %s108
      %p119 = scmp.eq.s32.totalorder %s29, 0
      %p120 = por %p118, %p119
      %p121 = scmp.ne.s32.totalorder %s107, %s108
      %p122 = scmp.eq.s32.totalorder %s30, 1
      %p123 = por %p121, %p122
      %p125 = scmp.ne.s32.totalorder %s108, %s124
      %p126 = scmp.eq.s32.totalorder %s30, 0
      %p127 = por %p125, %p126
      %s128 = ssub.s32 %s31, %s43
      %s129 = ssub.s32 %s32, %s39
      %s130 = sor.u32 %s128, %s129
      %p131 = scmp.eq.s32.totalorder %s130, 0
      %s133 = sadd.s32 %s132, 1
      %s134 = scalar_select %p131, %s132, %s133
      %p137 = pneg %p131
      %p138 = scmp.eq.s32.totalorder %s24, 1
      %p139 = por %p137, %p138
      %p140 = scmp.ne.s32.totalorder %s132, %s135
      %p141 = scmp.eq.s32.totalorder %s24, 0
      %p142 = por %p140, %p141
      %p143 = scmp.ne.s32.totalorder %s132, %s135
      %p144 = scmp.eq.s32.totalorder %s29, 1
      %p145 = por %p143, %p144
      %p146 = scmp.ne.s32.totalorder %s135, %s136
      %p147 = scmp.eq.s32.totalorder %s29, 0
      %p148 = por %p146, %p147
      %p149 = scmp.ne.s32.totalorder %s135, %s136
      %p150 = scmp.eq.s32.totalorder %s30, 1
      %p151 = por %p149, %p150
      %p153 = scmp.ne.s32.totalorder %s136, %s152
      %p154 = scmp.eq.s32.totalorder %s30, 0
      %p155 = por %p153, %p154
      %s156 = ssub.s32 %s31, %s43
      %s157 = ssub.s32 %s32, %s39
      %s158 = sor.u32 %s156, %s157
      %p159 = scmp.eq.s32.totalorder %s158, 0
      %s161 = sadd.s32 %s160, 1
      %s162 = scalar_select %p159, %s160, %s161
      %p165 = pneg %p159
      %p166 = scmp.eq.s32.totalorder %s24, 1
      %p167 = por %p165, %p166
      %p168 = scmp.ne.s32.totalorder %s160, %s163
      %p169 = scmp.eq.s32.totalorder %s24, 0
      %p170 = por %p168, %p169
      %p171 = scmp.ne.s32.totalorder %s160, %s163
      %p172 = scmp.eq.s32.totalorder %s29, 1
      %p173 = por %p171, %p172
      %p174 = scmp.ne.s32.totalorder %s163, %s164
      %p175 = scmp.eq.s32.totalorder %s29, 0
      %p176 = por %p174, %p175
      %p177 = scmp.ne.s32.totalorder %s163, %s164
      %p178 = scmp.eq.s32.totalorder %s30, 1
      %p179 = por %p177, %p178
      %p181 = scmp.ne.s32.totalorder %s164, %s180
      %p182 = scmp.eq.s32.totalorder %s30, 0
      %p183 = por %p181, %p182
      %s184 = ssub.s32 %s31, %s43
      %s185 = ssub.s32 %s32, %s39
      %s186 = sor.u32 %s184, %s185
      %p187 = scmp.eq.s32.totalorder %s186, 0
      %s189 = sadd.s32 %s188, 1
      %s190 = scalar_select %p187, %s188, %s189
      %p193 = pneg %p187
      %p194 = scmp.eq.s32.totalorder %s24, 1
      %p195 = por %p193, %p194
      %p196 = scmp.ne.s32.totalorder %s188, %s191
      %p197 = scmp.eq.s32.totalorder %s24, 0
      %p198 = por %p196, %p197
      %p199 = scmp.ne.s32.totalorder %s188, %s191
      %p200 = scmp.eq.s32.totalorder %s29, 1
      %p201 = por %p199, %p200
      %p202 = scmp.ne.s32.totalorder %s191, %s192
      %p203 = scmp.eq.s32.totalorder %s29, 0
      %p204 = por %p202, %p203
      %p205 = scmp.ne.s32.totalorder %s191, %s192
      %p206 = scmp.eq.s32.totalorder %s30, 1
      %p207 = por %p205, %p206
      %p209 = scmp.ne.s32.totalorder %s192, %s208
      %p210 = scmp.eq.s32.totalorder %s30, 0
      %p211 = por %p209, %p210
      %p212 = scmp.le.s32.totalorder 1, %s24
      %p213 = scmp.lt.s32.totalorder %s24, 3
      %p214 = pnand %p212, %p213
      %p215 = pneg %p214
      // Predicated region
      $region9: #{tpu_custom_call.1} parent=5 // pred_check
        _
      $region10: #{tpu_custom_call.1} parent=5 // pred_check_branch
        %217 = sbr.rel (%p214) target = $region12
      $region11: #{tpu_custom_call.1} parent=5 // pred_region
        %s218 = ssub.s32 %s24, 1
      $region12: #{tpu_custom_call.1} parent=5 // pred_fallthru
        _
      %p219 = scmp.lt.s32.totalorder %s24, 2
      // Predicated region
      $region13: #{tpu_custom_call.1} parent=5 // pred_check
        %p220 = pneg %p219
      $region14: #{tpu_custom_call.1} parent=5 // pred_check_branch
        %222 = sbr.rel (%p220) target = $region16
      $region15: #{tpu_custom_call.1} parent=5 // pred_region
        // Predicated region
        $region17: #{tpu_custom_call.1} parent=15 // pred_check
          %p223 = pneg %p58
        $region18: #{tpu_custom_call.1} parent=15 // pred_check_branch
          %225 = sbr.rel (%p223) target = $region20
        $region19: #{tpu_custom_call.1} parent=15 // pred_region
          %s226 = sand.u32 %s48, 1
          %s227 = scalar_lea.sflag [#allocation3], %s226
          %s228 = sand.u32 %s48, 1
          %s229 = smul.addr %s228, 2
          %s230 = scalar_lea.vmem [#allocation2], %s229
          %s232 = ssub.s32 32, 32
          %233 = vsyncadd %s227, %s232
          %s234 = sadd.s32 %s32, %s31
          %s235 = smul.addr %s234, 32
          %s236 = scalar_lea.hbm %s0, %s235
          %s238 = sshll.u32 %s230, 4
          %s239 = int_to_ptr.vmem [resolvable:$true] %s238
          %241 = dma.hbm_to_vmem [thread:$0]  %s236, 32, %s239, %s227
        $region20: #{tpu_custom_call.1} parent=15 // pred_fallthru
          _
        // Predicated region
        $region21: #{tpu_custom_call.1} parent=15 // pred_check
          %p242 = pneg %p86
        $region22: #{tpu_custom_call.1} parent=15 // pred_check_branch
          %244 = sbr.rel (%p242) target = $region24
        $region23: #{tpu_custom_call.1} parent=15 // pred_region
          %s245 = sand.u32 %s24, 1
          %s246 = scalar_lea.sflag [#allocation6], %s245
          %s247 = sand.u32 %s76, 1
          %s248 = smul.addr %s247, 2
          %s249 = scalar_lea.vmem [#allocation5], %s248
          %s251 = ssub.s32 32, 32
          %252 = vsyncadd %s246, %s251
          %s253 = sadd.s32 %s32, %s31
          %s254 = smul.addr %s253, 32
          %s255 = scalar_lea.hbm %s1, %s254
          %s257 = sshll.u32 %s249, 4
          %s258 = int_to_ptr.vmem [resolvable:$true] %s257
          %260 = dma.hbm_to_vmem [thread:$0]  %s255, 32, %s258, %s246
        $region24: #{tpu_custom_call.1} parent=15 // pred_fallthru
          _
        // Predicated region
        $region25: #{tpu_custom_call.1} parent=15 // pred_check
          %p261 = pneg %p114
        $region26: #{tpu_custom_call.1} parent=15 // pred_check_branch
          %263 = sbr.rel (%p261) target = $region28
        $region27: #{tpu_custom_call.1} parent=15 // pred_region
          %s264 = sand.u32 %s24, 1
          %s265 = scalar_lea.sflag [#allocation6], %s264
          %s266 = sand.u32 %s104, 1
          %s267 = smul.addr %s266, 8
          %s268 = scalar_lea.vmem [#allocation7], %s267
          %s270 = ssub.s32 128, 128
          %271 = vsyncadd %s265, %s270
          %s272 = smul.addr %s31, 4
          %s273 = sadd.s32 %s32, %s272
          %s274 = smul.addr %s273, 32
          %s275 = scalar_lea.hbm %s2, %s274
          %s276 = sshll.u32 %s268, 4
          %s277 = int_to_ptr.vmem [resolvable:$true] %s276
          %282 = dma.hbm_to_vmem [thread:$0]  %s275, 128, %s277, %s265, 32, 32, 2
        $region28: #{tpu_custom_call.1} parent=15 // pred_fallthru
          _
      $region16: #{tpu_custom_call.1} parent=5 // pred_fallthru
        _
      %p283 = scmp.le.s32.totalorder 1, %s24
      %p284 = scmp.lt.s32.totalorder %s24, 3
      %p285 = pnand %p283, %p284
      %p286 = pneg %p285
      // Predicated region
      $region29: #{tpu_custom_call.1} parent=5 // pred_check
        _
      $region30: #{tpu_custom_call.1} parent=5 // pred_check_branch
        %288 = sbr.rel (%p285) target = $region32
      $region31: #{tpu_custom_call.1} parent=5 // pred_region
        %s289 = ssub.s32 %s24, 1
        %s290 = sand.u32 %s51, 1
        %s291 = scalar_lea.sflag [#allocation3], %s290
        %s292 = sand.u32 %s51, 1
        %s293 = smul.addr %s292, 2
        %s294 = scalar_lea.vmem [#allocation2], %s293
        // Predicated region
        $region33: #{tpu_custom_call.1} parent=31 // pred_check
          %p295 = pneg %p64
        $region34: #{tpu_custom_call.1} parent=31 // pred_check_branch
          %297 = sbr.rel (%p295) target = $region36
        $region35: #{tpu_custom_call.1} parent=31 // pred_region
          %298 = dma.done %s291, 32
        $region36: #{tpu_custom_call.1} parent=31 // pred_fallthru
          _
        %s299 = sand.u32 %s29, 1
        %s300 = scalar_lea.sflag [#allocation6], %s299
        %s301 = sand.u32 %s79, 1
        %s302 = smul.addr %s301, 2
        %s303 = scalar_lea.vmem [#allocation5], %s302
        // Predicated region
        $region37: #{tpu_custom_call.1} parent=31 // pred_check
          %p304 = pneg %p92
        $region38: #{tpu_custom_call.1} parent=31 // pred_check_branch
          %306 = sbr.rel (%p304) target = $region40
        $region39: #{tpu_custom_call.1} parent=31 // pred_region
          %307 = dma.done %s300, 32
        $region40: #{tpu_custom_call.1} parent=31 // pred_fallthru
          _
        %s308 = sand.u32 %s29, 1
        %s309 = scalar_lea.sflag [#allocation6], %s308
        %s310 = sand.u32 %s107, 1
        %s311 = smul.addr %s310, 8
        %s312 = scalar_lea.vmem [#allocation7], %s311
        // Predicated region
        $region41: #{tpu_custom_call.1} parent=31 // pred_check
          %p313 = pneg %p120
        $region42: #{tpu_custom_call.1} parent=31 // pred_check_branch
          %315 = sbr.rel (%p313) target = $region44
        $region43: #{tpu_custom_call.1} parent=31 // pred_region
          %316 = dma.done %s309, 128
        $region44: #{tpu_custom_call.1} parent=31 // pred_fallthru
          _
        %s317 = sand.u32 %s51, 1
        %s318 = scalar_lea.sflag [#allocation3], %s317
        %s319 = sand.u32 %s51, 1
        %s320 = smul.addr %s319, 2
        %s321 = scalar_lea.vmem [#allocation2], %s320
        %p322 = pneg %p64
        %p323 = pneg %p61
        %s324 = sand.u32 %s29, 1
        %s325 = scalar_lea.sflag [#allocation6], %s324
        %s326 = sand.u32 %s79, 1
        %s327 = smul.addr %s326, 2
        %s328 = scalar_lea.vmem [#allocation5], %s327
        %p329 = pneg %p92
        %p330 = pneg %p89
        %s331 = sand.u32 %s29, 1
        %s332 = scalar_lea.sflag [#allocation6], %s331
        %s333 = sand.u32 %s107, 1
        %s334 = smul.addr %s333, 8
        %s335 = scalar_lea.vmem [#allocation7], %s334
        %p336 = pneg %p120
        %p337 = pneg %p117
        %p338 = pneg %p148
        %p339 = pneg %p145
        %s340 = sand.u32 %s135, 1
        %s341 = scalar_lea.sflag [#allocation4], %s340
        %s342 = sand.u32 %s135, 1
        %s343 = smul.addr %s342, 2
        %s344 = scalar_lea.vmem [#allocation8], %s343
        %p345 = pneg %p176
        %p346 = pneg %p173
        %s347 = sand.u32 %s29, 1
        %s348 = scalar_lea.sflag [#allocation10], %s347
        %s349 = sand.u32 %s163, 1
        %s350 = smul.addr %s349, 2
        %s351 = scalar_lea.vmem [#allocation9], %s350
        %p352 = pneg %p204
        %p353 = pneg %p201
        %s354 = sand.u32 %s29, 1
        %s355 = scalar_lea.sflag [#allocation10], %s354
        %s356 = sand.u32 %s191, 1
        %s357 = smul.addr %s356, 2
        %s358 = scalar_lea.vmem [#allocation11], %s357
        %v359 = vld [vmem:[%s294] sm:$0x3]
        %v360 = vld [vmem:[%s303] sm:$0x3]
        %v361 = vld [vmem:[%s312] sm:$0x3]
        %v362 = vld [vmem:[%s312 + $0x2] sm:$0x3]
        %v363 = vld [vmem:[%s312 + $0x4] sm:$0x3]
        %v364 = vld [vmem:[%s312 + $0x6] sm:$0x3]
        %v365 = vsub.f32 0.0, %v359
        %v366 = vsub.f32 0.0, %v365
        %v367 = vmax.f32 %v366, 0.0
        %vm368 = vcmp.ne.f32.partialorder %v366, %v366
        %v369 = vadd.f32 %v366, 0.0
        %v370 = vand.u32 2147483647, %v366
        %v371 = vsub.f32 0.0, %v370
        %v372 = vmul.f32 %v371, 1.442695
        %v373 = vpow.pop %v372
        %v374 = vadd.f32 %v373, 1.0
        %v375 = vlog2.pop %v374
        %v376 = vmul.f32 %v375, 0.6931472
        %v377 = vmul.f32 -0.5, %v373
        %v378 = vadd.f32 %v377, 1.0
        %v379 = vmul.f32 %v378, %v373
        %v380 = vand.u32 2147483647, %v373
        %vm381 = vcmp.lt.f32.partialorder %v380, 0.0004427343
        %v382 = vsel %vm381, %v379, %v376
        %v383 = vadd.f32 %v367, %v382
        %v384 = vsel %vm368, %v369, %v383
        %v385 = vsub.f32 0.0, %v384
        %v386 = vadd.f32 %v359, %v385
        %v387 = vmul.f32 %v385, 1.442695
        %v388 = vpow.pop %v387
        %v389 = vsub.f32 1.0, %v388
        %v390 = vmul.f32 %v360, -0.25
        %v391 = vmul.f32 %v388, %v388
        %v392 = vmul.f32 %v390, %v391
        %v393 = vmul.f32 %v392, %v386
        %v394 = vsub.f32 1.0, %v360
        %v395 = vmul.f32 %v394, 0.75
        %v396 = vmul.f32 %v389, %v389
        %v397 = vmul.f32 %v395, %v396
        %v398 = vmul.f32 %v397, %v385
        %v399 = vsub.f32 %v393, %v398
        %v400 = vsub.f32 %v361, %v360
        %v401 = vsub.f32 %v362, %v360
        %v402 = vsub.f32 %v363, %v360
        %v403 = vsub.f32 %v364, %v360
        %v404 = vand.u32 2147483647, %v400
        %v405 = vand.u32 2147483647, %v401
        %v406 = vand.u32 2147483647, %v402
        %v407 = vand.u32 2147483647, %v403
        %v408 = vmin.f32 %v404, 1.0
        %v409 = vmin.f32 %v405, 1.0
        %v410 = vmin.f32 %v406, 1.0
        %v411 = vmin.f32 %v407, 1.0
        %v412 = vmul.f32 %v408, 0.5
        %v413 = vmul.f32 %v409, 0.5
        %v414 = vmul.f32 %v410, 0.5
        %v415 = vmul.f32 %v411, 0.5
        %v416 = vsub.f32 %v404, %v412
        %v417 = vsub.f32 %v405, %v413
        %v418 = vsub.f32 %v406, %v414
        %v419 = vsub.f32 %v407, %v415
        %v420 = vmul.f32 %v408, %v416
        %v421 = vmul.f32 %v409, %v417
        %v422 = vmul.f32 %v410, %v418
        %v423 = vmul.f32 %v411, %v419
        %vm424 = vcmask 1041408
        %v425 = vsel %vm424, %v420, 0.0
        %v426 = vsel %vm424, %v421, 0.0
        %v427 = vadd.f32 %v425, %v426
        %v428 = vsel %vm424, %v422, 0.0
        %v429 = vadd.f32 %v427, %v428
        %v430 = vsel %vm424, %v423, 0.0
        %v431 = vadd.f32 %v429, %v430
        %v432 = vmul.f32 %v360, %v431
        %433 = vst [vmem:[%s344] sm:$0x3] %v399
        %434 = vst [vmem:[%s351] sm:$0x3] %v432
        %435 = vst [vmem:[%s358] sm:$0x3] %v360
        %s436 = sand.u32 %s135, 1
        %s437 = scalar_lea.sflag [#allocation4], %s436
        %s438 = sand.u32 %s135, 1
        %s439 = smul.addr %s438, 2
        %s440 = scalar_lea.vmem [#allocation8], %s439
        %s441 = sand.u32 %s29, 1
        %s442 = scalar_lea.sflag [#allocation10], %s441
        %s443 = sand.u32 %s163, 1
        %s444 = smul.addr %s443, 2
        %s445 = scalar_lea.vmem [#allocation9], %s444
        %s446 = sand.u32 %s29, 1
        %s447 = scalar_lea.sflag [#allocation10], %s446
        %s448 = sand.u32 %s191, 1
        %s449 = smul.addr %s448, 2
        %s450 = scalar_lea.vmem [#allocation11], %s449
        // Predicated region
        $region45: #{tpu_custom_call.1} parent=31 // pred_check
          %p451 = pneg %p145
        $region46: #{tpu_custom_call.1} parent=31 // pred_check_branch
          %453 = sbr.rel (%p451) target = $region48
        $region47: #{tpu_custom_call.1} parent=31 // pred_region
          %s455 = ssub.s32 32, 32
          %456 = vsyncadd %s437, %s455
          %s457 = sadd.s32 %s34, %s33
          %s458 = smul.addr %s457, 32
          %s459 = scalar_lea.hbm %s3, %s458
          %s461 = sshll.u32 %s440, 4
          %s462 = int_to_ptr.vmem [resolvable:$true] %s461
          %464 = dma.vmem_to_hbm [thread:$0]  %s462, 32, %s459, %s437
        $region48: #{tpu_custom_call.1} parent=31 // pred_fallthru
          _
        // Predicated region
        $region49: #{tpu_custom_call.1} parent=31 // pred_check
          %p465 = pneg %p173
        $region50: #{tpu_custom_call.1} parent=31 // pred_check_branch
          %467 = sbr.rel (%p465) target = $region52
        $region51: #{tpu_custom_call.1} parent=31 // pred_region
          %s469 = ssub.s32 32, 32
          %470 = vsyncadd %s442, %s469
          %s471 = sadd.s32 %s34, %s33
          %s472 = smul.addr %s471, 32
          %s473 = scalar_lea.hbm %s4, %s472
          %s475 = sshll.u32 %s445, 4
          %s476 = int_to_ptr.vmem [resolvable:$true] %s475
          %478 = dma.vmem_to_hbm [thread:$0]  %s476, 32, %s473, %s442
        $region52: #{tpu_custom_call.1} parent=31 // pred_fallthru
          _
        // Predicated region
        $region53: #{tpu_custom_call.1} parent=31 // pred_check
          %p479 = pneg %p201
        $region54: #{tpu_custom_call.1} parent=31 // pred_check_branch
          %481 = sbr.rel (%p479) target = $region56
        $region55: #{tpu_custom_call.1} parent=31 // pred_region
          %s483 = ssub.s32 32, 32
          %484 = vsyncadd %s447, %s483
          %s485 = sadd.s32 %s34, %s33
          %s486 = smul.addr %s485, 32
          %s487 = scalar_lea.hbm %s5, %s486
          %s489 = sshll.u32 %s450, 4
          %s490 = int_to_ptr.vmem [resolvable:$true] %s489
          %492 = dma.vmem_to_hbm [thread:$0]  %s490, 32, %s487, %s447
        $region56: #{tpu_custom_call.1} parent=31 // pred_fallthru
          _
      $region32: #{tpu_custom_call.1} parent=5 // pred_fallthru
        _
      %p493 = scmp.le.s32.totalorder 2, %s24
      // Predicated region
      $region57: #{tpu_custom_call.1} parent=5 // pred_check
        %p494 = pneg %p493
      $region58: #{tpu_custom_call.1} parent=5 // pred_check_branch
        %496 = sbr.rel (%p494) target = $region60
      $region59: #{tpu_custom_call.1} parent=5 // pred_region
        %s497 = ssub.s32 %s24, 2
        // Predicated region
        $region61: #{tpu_custom_call.1} parent=59 // pred_check
          %p498 = pneg %p151
        $region62: #{tpu_custom_call.1} parent=59 // pred_check_branch
          %500 = sbr.rel (%p498) target = $region64
        $region63: #{tpu_custom_call.1} parent=59 // pred_region
          %s501 = sand.u32 %s136, 1
          %s502 = scalar_lea.sflag [#allocation4], %s501
          %s503 = sand.u32 %s136, 1
          %s504 = smul.addr %s503, 2
          %s505 = scalar_lea.vmem [#allocation8], %s504
          %506 = dma.done %s502, 32
        $region64: #{tpu_custom_call.1} parent=59 // pred_fallthru
          _
        // Predicated region
        $region65: #{tpu_custom_call.1} parent=59 // pred_check
          %p507 = pneg %p179
        $region66: #{tpu_custom_call.1} parent=59 // pred_check_branch
          %509 = sbr.rel (%p507) target = $region68
        $region67: #{tpu_custom_call.1} parent=59 // pred_region
          %s510 = sand.u32 %s30, 1
          %s511 = scalar_lea.sflag [#allocation10], %s510
          %s512 = sand.u32 %s164, 1
          %s513 = smul.addr %s512, 2
          %s514 = scalar_lea.vmem [#allocation9], %s513
          %515 = dma.done %s511, 32
        $region68: #{tpu_custom_call.1} parent=59 // pred_fallthru
          _
        // Predicated region
        $region69: #{tpu_custom_call.1} parent=59 // pred_check
          %p516 = pneg %p207
        $region70: #{tpu_custom_call.1} parent=59 // pred_check_branch
          %518 = sbr.rel (%p516) target = $region72
        $region71: #{tpu_custom_call.1} parent=59 // pred_region
          %s519 = sand.u32 %s30, 1
          %s520 = scalar_lea.sflag [#allocation10], %s519
          %s521 = sand.u32 %s192, 1
          %s522 = smul.addr %s521, 2
          %s523 = scalar_lea.vmem [#allocation11], %s522
          %524 = dma.done %s520, 32
        $region72: #{tpu_custom_call.1} parent=59 // pred_fallthru
          _
      $region60: #{tpu_custom_call.1} parent=5 // pred_fallthru
        _
    $region6: #{tpu_custom_call.1} parent=1 // loop_footer
      %s28 = sadd.s32 1, %s24
    $region7: #{tpu_custom_call.1} parent=1 // loop_footer_branch
      %23 = sbr.rel target = $region3
    $region8: #{tpu_custom_call.1} parent=1 // loop_exit
      _
    %525 = vsyncpa [#allocation3], 1
    %s526 = scalar_lea.sflag [#allocation3], 1
    %527 = vsyncpa %s526, 1
    %528 = vsyncpa [#allocation6], 1
    %s529 = scalar_lea.sflag [#allocation6], 1
    %530 = vsyncpa %s529, 1
    %531 = vsyncpa [#allocation4], 1
    %s532 = scalar_lea.sflag [#allocation4], 1
    %533 = vsyncpa %s532, 1
    %534 = vsyncpa [#allocation10], 1
    %s535 = scalar_lea.sflag [#allocation10], 1
    %536 = vsyncpa %s535, 1

</llo_original>
